<compile_context>
chip_gen: v7x
topology: tpu7x:2x2x1
jax: 0.10.0
libtpu: 0.0.40
codegen_flags: <defaults>
</compile_context>

<pallas_src>
import functools

import jax
import jax.numpy as jnp
from jax.experimental import pallas as pl
from jax.experimental.pallas import tpu as pltpu


# ---------------------------------------------------------------------------
# Kernels
# ---------------------------------------------------------------------------

def ffn_resident_kernel(x_ref, w1_ref, b1_ref, w2_ref, b2_ref, o_ref):
    """One row tile; full w1/w2 resident in VMEM. gamma/beta pre-folded."""
    # LayerNorm (no affine here -- folded into w1'/b1' by the wrapper).
    x = x_ref[...].astype(jnp.float32)                         # (tm, D)
    mean = jnp.mean(x, axis=-1, keepdims=True)
    xc = x - mean
    var = jnp.mean(xc * xc, axis=-1, keepdims=True)            # biased variance
    xn = (xc * jax.lax.rsqrt(var + 1e-5)).astype(w1_ref.dtype)

    # Linear1 -> Swish (f32 on VPU/EUP, f32 MXU accumulation).
    h = jnp.dot(xn, w1_ref[...], preferred_element_type=jnp.float32)
    h = h + b1_ref[...]
    h = h * jax.nn.sigmoid(h)

    # TODO(synk): dropout omitted (inference / identity).

    # Linear2.
    out = jnp.dot(h.astype(w2_ref.dtype), w2_ref[...],
                  preferred_element_type=jnp.float32) + b2_ref[...]
    o_ref[...] = out.astype(o_ref.dtype)


def ffn_chunked_kernel(x_ref, w1_ref, b1_ref, w2_ref, b2_ref, o_ref,
                       xn_ref, acc_ref):
    """Fallback for very large D*H: the hidden dim is split over grid axis 1."""
    k = pl.program_id(1)

    # First H-chunk of this row tile: LayerNorm once, cache it, init accumulator.
    @pl.when(k == 0)
    def _():
        x = x_ref[...].astype(jnp.float32)
        mean = jnp.mean(x, axis=-1, keepdims=True)
        xc = x - mean
        var = jnp.mean(xc * xc, axis=-1, keepdims=True)
        xn_ref[...] = (xc * jax.lax.rsqrt(var + 1e-5)).astype(xn_ref.dtype)
        acc_ref[...] = jnp.broadcast_to(b2_ref[...], acc_ref.shape)

    # Linear1 chunk + Swish.
    h = jnp.dot(xn_ref[...], w1_ref[...], preferred_element_type=jnp.float32)
    h = h + b1_ref[...]
    h = h * jax.nn.sigmoid(h)

    # TODO(synk): dropout omitted (inference / identity).

    # Linear2 chunk accumulated in f32.
    acc_ref[...] += jnp.dot(h.astype(w2_ref.dtype), w2_ref[...],
                            preferred_element_type=jnp.float32)

    @pl.when(k == pl.num_programs(1) - 1)
    def _():
        o_ref[...] = acc_ref[...].astype(o_ref.dtype)


# ---------------------------------------------------------------------------
# Sizing helpers
# ---------------------------------------------------------------------------

def _round_up(n, m):
    return (n + m - 1) // m * m


def _vmem_budget_bytes():
    """Per-generation VMEM budget with headroom (~40 MiB v7x, ~80 MiB v5e/v6e)."""
    try:
        cap = int(pltpu.get_tpu_info().vmem_capacity_bytes)
    except Exception:
        cap = 64 * 2**20   # conservative (v7x per-core VMEM)
    return int(min(cap * 5 // 8, 80 * 2**20))


def _resident_vmem_bytes(tm, D, H, ix, itm):
    return (2 * 2 * D * H * itm            # w1 + w2 (double-buffered by pipeline)
            + 2 * tm * D * ix              # x blocks (double-buffered)
            + 2 * tm * D * ix              # output blocks
            + 2 * (H + D) * 4              # biases
            + tm * H * (4 + itm)           # live (tm, H) intermediate (+ cast copy)
            + 2 * tm * D * 4)              # LN / output f32 temporaries


def _chunked_vmem_bytes(tm, D, H, th, ix, itm):
    return (2 * tm * D * ix                # x blocks
            + 2 * tm * D * ix              # output blocks
            + 2 * (D * th + th * D) * itm  # w1 / w2 chunks (double-buffered)
            + 2 * (th + D) * 4             # bias chunks
            + tm * D * (itm + 4)           # xn cache + f32 accumulator scratch
            + tm * th * (4 + itm))         # live (tm, th) intermediate


def _pick_h_chunk(H, target, fits):
    """Largest multiple-of-128 divisor of H that is <= target and fits VMEM."""
    if H % 128 != 0:
        return H                           # ill-shaped hidden dim: single chunk
    t = min(H, max(128, (target // 128) * 128))
    while t >= 128:
        if H % t == 0 and fits(t):
            return t
        t -= 128
    return 128                             # smallest aligned fallback


# ---------------------------------------------------------------------------
# Wrapper
# ---------------------------------------------------------------------------

def prepare_ffn_params(gamma, beta, w1, b1, w2, b2, *,
                       matmul_dtype=jnp.bfloat16):
    """One-time parameter prep (call once, outside the per-step path).

    Folds the LayerNorm affine into Linear1 and casts MXU operands to
    `matmul_dtype` so no per-call weight pass over HBM is needed.
    """
    gamma = gamma.astype(jnp.float32)
    beta = beta.astype(jnp.float32)
    w1f = w1.astype(jnp.float32)
    w1p = gamma[:, None] * w1f                       # (D, H)
    b1p = b1.astype(jnp.float32) + beta @ w1f        # (H,)
    return {
        "w1": w1p.astype(matmul_dtype),
        "b1": b1p.reshape(1, -1).astype(jnp.float32),
        "w2": w2.astype(matmul_dtype),
        "b2": b2.reshape(1, -1).astype(jnp.float32),
    }


def feed_forward_module(x, params, *, tm=512, h_chunk=1024, force_chunked=False):
    """x: (B, T, D) -> (B, T, D). `params` from prepare_ffn_params."""
    w1, b1, w2, b2 = params["w1"], params["b1"], params["w2"], params["b2"]
    B, T, D = x.shape
    H = w1.shape[1]
    M = B * T
    x2d = x.reshape(M, D)

    ix = jnp.dtype(x.dtype).itemsize
    itm = jnp.dtype(w1.dtype).itemsize
    budget = _vmem_budget_bytes()

    # Row tile: large (amortizes per-step overhead / per-tile LayerNorm),
    # multiple of 8 sublanes, capped so the "parallel" row axis has >= 2 tiles
    # whenever possible (v7x shards it across its 2 TensorCores).
    tm_eff = max(8, min(_round_up(tm, 8), _round_up(pl.cdiv(M, 2), 8)))
    n_row_tiles = pl.cdiv(M, tm_eff)

    use_resident = (not force_chunked) and \
        _resident_vmem_bytes(tm_eff, D, H, ix, itm) <= budget

    if use_resident:
        vmem_est = _resident_vmem_bytes(tm_eff, D, H, ix, itm)
        cost = pl.CostEstimate(
            flops=int(4 * M * D * H),                 # two matmuls: 2*M*D*H each
            transcendentals=int(2 * M * H),           # sigmoid ~ exp + reciprocal
            bytes_accessed=int(2 * M * D * ix         # x read + y write
                               + 2 * D * H * itm      # weights read once
                               + (H + D) * 4),
        )
        out = pl.pallas_call(
            ffn_resident_kernel,
            out_shape=jax.ShapeDtypeStruct((M, D), x.dtype),
            grid_spec=pltpu.PrefetchScalarGridSpec(
                num_scalar_prefetch=0,
                grid=(n_row_tiles,),
                in_specs=[
                    pl.BlockSpec((tm_eff, D), lambda i: (i, 0)),   # x rows
                    pl.BlockSpec((D, H), lambda i: (0, 0)),        # w1 (resident)
                    pl.BlockSpec((1, H), lambda i: (0, 0)),        # b1
                    pl.BlockSpec((H, D), lambda i: (0, 0)),        # w2 (resident)
                    pl.BlockSpec((1, D), lambda i: (0, 0)),        # b2
                ],
                out_specs=pl.BlockSpec((tm_eff, D), lambda i: (i, 0)),
            ),
            compiler_params=pltpu.CompilerParams(
                dimension_semantics=("parallel",),
                vmem_limit_bytes=int(min(budget, max(16 * 2**20, 2 * vmem_est))),
            ),
            cost_estimate=cost,
        )(x2d, w1, b1, w2, b2)
        return out.reshape(B, T, D)

    # ---- Chunked fallback (very large D*H only) ----------------------------
    fits = functools.partial(
        lambda th_, tm_, D_, H_, ix_, itm_, bud:
            _chunked_vmem_bytes(tm_, D_, H_, th_, ix_, itm_) <= bud,
        tm_=tm_eff, D_=D, H_=H, ix_=ix, itm_=itm, bud=budget)
    th = _pick_h_chunk(H, h_chunk, fits)
    n_k = pl.cdiv(H, th) if H % th else H // th
    vmem_est = _chunked_vmem_bytes(tm_eff, D, H, th, ix, itm)
    cost = pl.CostEstimate(
        flops=int(4 * M * D * H),
        transcendentals=int(2 * M * H),
        bytes_accessed=int(2 * M * D * ix
                           + n_row_tiles * 2 * D * H * itm   # weights re-streamed
                           + (H + D) * 4),
    )
    out = pl.pallas_call(
        ffn_chunked_kernel,
        out_shape=jax.ShapeDtypeStruct((M, D), x.dtype),
        grid_spec=pltpu.PrefetchScalarGridSpec(
            num_scalar_prefetch=0,
            grid=(n_row_tiles, n_k),
            in_specs=[
                pl.BlockSpec((tm_eff, D), lambda i, k: (i, 0)),   # x rows
                pl.BlockSpec((D, th), lambda i, k: (0, k)),       # w1 chunk
                pl.BlockSpec((1, th), lambda i, k: (0, k)),       # b1 chunk
                pl.BlockSpec((th, D), lambda i, k: (k, 0)),       # w2 chunk
                pl.BlockSpec((1, D), lambda i, k: (0, 0)),        # b2
            ],
            out_specs=pl.BlockSpec((tm_eff, D), lambda i, k: (i, 0)),
            scratch_shapes=[
                pltpu.VMEM((tm_eff, D), w1.dtype),    # cached LayerNorm output
                pltpu.VMEM((tm_eff, D), jnp.float32), # f32 output accumulator
            ],
        ),
        compiler_params=pltpu.CompilerParams(
            dimension_semantics=("parallel", "arbitrary"),
            vmem_limit_bytes=int(min(budget, max(16 * 2**20, 2 * vmem_est))),
        ),
        cost_estimate=cost,
    )(x2d, w1, b1, w2, b2)
    return out.reshape(B, T, D)


# ---------------------------------------------------------------------------
# Reference + demo
# ---------------------------------------------------------------------------

def reference(x, gamma, beta, w1, b1, w2, b2):
    xf = x.astype(jnp.float32)
    mean = jnp.mean(xf, axis=-1, keepdims=True)
    var = jnp.mean((xf - mean) ** 2, axis=-1, keepdims=True)
    xn = (xf - mean) * jax.lax.rsqrt(var + 1e-5) * gamma + beta
    h = xn @ w1 + b1
    h = h * jax.nn.sigmoid(h)
    return (h @ w2 + b2).astype(x.dtype)


if __name__ == "__main__":
    # Small shapes consistent with the module: encoder_dim=32, expansion_factor=4.
    B, T, D, EXP = 2, 8, 32, 4
    H = D * EXP

    key = jax.random.PRNGKey(0)
    k_x, k_w1, k_b1, k_w2, k_b2, k_g, k_bt = jax.random.split(key, 7)

    x = jax.random.normal(k_x, (B, T, D), dtype=jnp.float32)
    gamma = 1.0 + 0.1 * jax.random.normal(k_g, (D,), dtype=jnp.float32)
    beta = 0.1 * jax.random.normal(k_bt, (D,), dtype=jnp.float32)
    w1 = jax.random.normal(k_w1, (D, H), dtype=jnp.float32) * (1.0 / jnp.sqrt(D))
    b1 = 0.01 * jax.random.normal(k_b1, (H,), dtype=jnp.float32)
    w2 = jax.random.normal(k_w2, (H, D), dtype=jnp.float32) * (1.0 / jnp.sqrt(H))
    b2 = 0.01 * jax.random.normal(k_b2, (D,), dtype=jnp.float32)

    y_ref = reference(x, gamma, beta, w1, b1, w2, b2)

    # One-time parameter prep (weight cast + LN-affine fold hoisted out of the call path).
    params_f32 = prepare_ffn_params(gamma, beta, w1, b1, w2, b2,
                                    matmul_dtype=jnp.float32)
    params_bf16 = prepare_ffn_params(gamma, beta, w1, b1, w2, b2,
                                     matmul_dtype=jnp.bfloat16)

    # 1) Exact f32-MXU resident-weight path (tight tolerance).
    y32 = jax.block_until_ready(feed_forward_module(x, params_f32))
    assert y32.shape == (B, T, D)
    assert jnp.allclose(y32, y_ref, atol=1e-4, rtol=1e-4), "f32 resident mismatch"

    # 2) Default bf16-on-MXU resident path (LN/Swish/accum stay f32).
    ybf = jax.block_until_ready(feed_forward_module(x, params_bf16))
    assert jnp.allclose(ybf, y_ref, atol=5e-2, rtol=5e-2), "bf16 resident mismatch"

    # 3) Row count not a multiple of the tile -> exercises ragged boundary blocks.
    x3 = jax.random.normal(k_x, (3, 7, D), dtype=jnp.float32)
    y3 = jax.block_until_ready(feed_forward_module(x3, params_bf16))
    y3_ref = reference(x3, gamma, beta, w1, b1, w2, b2)
    assert y3.shape == (3, 7, D)
    assert jnp.allclose(y3, y3_ref, atol=5e-2, rtol=5e-2), "ragged path mismatch"

    # 4) Chunked fallback path (forced), f32 for a tight check.
    D4, H4 = 128, 512
    k4 = jax.random.split(key, 8)
    x4 = jax.random.normal(k4[0], (2, 24, D4), dtype=jnp.float32)
    g4 = 1.0 + 0.1 * jax.random.normal(k4[1], (D4,), dtype=jnp.float32)
    bt4 = 0.1 * jax.random.normal(k4[2], (D4,), dtype=jnp.float32)
    w14 = jax.random.normal(k4[3], (D4, H4), dtype=jnp.float32) / jnp.sqrt(D4)
    b14 = 0.01 * jax.random.normal(k4[4], (H4,), dtype=jnp.float32)
    w24 = jax.random.normal(k4[5], (H4, D4), dtype=jnp.float32) / jnp.sqrt(H4)
    b24 = 0.01 * jax.random.normal(k4[6], (D4,), dtype=jnp.float32)
    params4 = prepare_ffn_params(g4, bt4, w14, b14, w24, b24,
                                 matmul_dtype=jnp.float32)
    y4 = jax.block_until_ready(
        feed_forward_module(x4, params4, h_chunk=128, force_chunked=True))
    y4_ref = reference(x4, g4, bt4, w14, b14, w24, b24)
    assert jnp.allclose(y4, y4_ref, atol=1e-4, rtol=1e-4), "chunked path mismatch"

    print("KERNEL_OK")
</pallas_src>

<mosaic_0001>
module attributes {stable_mosaic.version = 11 : i64} {
  func.func @ffn_resident_kernel(%arg0: i32, %arg1: memref<8x32xf32, #tpu.memory_space<vmem>>, %arg2: memref<32x128xf32, #tpu.memory_space<vmem>>, %arg3: memref<1x128xf32, #tpu.memory_space<vmem>>, %arg4: memref<128x32xf32, #tpu.memory_space<vmem>>, %arg5: memref<1x32xf32, #tpu.memory_space<vmem>>, %arg6: memref<8x32xf32, #tpu.memory_space<vmem>>) attributes {dimension_semantics = [#tpu.dimension_semantics<parallel>], iteration_bounds = array<i64: 2>, scalar_prefetch = 0 : i64, scratch_operands = 0 : i64, tpu.core_type = #tpu.core_type<tc>, window_params = [{transform_indices = @transform_0, window_bounds = array<i64: 8, 32>}, {pipeline_mode = #tpu.pipeline_mode<synchronous>, transform_indices = @transform_1, window_bounds = array<i64: 32, 128>}, {pipeline_mode = #tpu.pipeline_mode<synchronous>, transform_indices = @transform_2, window_bounds = array<i64: 1, 128>}, {pipeline_mode = #tpu.pipeline_mode<synchronous>, transform_indices = @transform_3, window_bounds = array<i64: 128, 32>}, {pipeline_mode = #tpu.pipeline_mode<synchronous>, transform_indices = @transform_4, window_bounds = array<i64: 1, 32>}, {transform_indices = @transform_5, window_bounds = array<i64: 8, 32>}]} {
    %c0 = arith.constant 0 : index
    %c0_0 = arith.constant 0 : index
    %0 = vector.load %arg1[%c0, %c0_0] : memref<8x32xf32, #tpu.memory_space<vmem>>, vector<8x32xf32>
    %cst = arith.constant dense<0.000000e+00> : vector<8xf32>
    %1 = vector.multi_reduction <add>, %0, %cst [1] : vector<8x32xf32> to vector<8xf32>
    %2 = vector.shape_cast %1 : vector<8xf32> to vector<8x1xf32>
    %cst_1 = arith.constant 3.200000e+01 : f32
    %3 = vector.broadcast %cst_1 : f32 to vector<8x1xf32>
    %4 = arith.divf %2, %3 : vector<8x1xf32>
    %5 = vector.broadcast %4 : vector<8x1xf32> to vector<8x32xf32>
    %6 = arith.subf %0, %5 : vector<8x32xf32>
    %7 = arith.mulf %6, %6 : vector<8x32xf32>
    %cst_2 = arith.constant dense<0.000000e+00> : vector<8xf32>
    %8 = vector.multi_reduction <add>, %7, %cst_2 [1] : vector<8x32xf32> to vector<8xf32>
    %9 = vector.shape_cast %8 : vector<8xf32> to vector<8x1xf32>
    %cst_3 = arith.constant 3.200000e+01 : f32
    %10 = vector.broadcast %cst_3 : f32 to vector<8x1xf32>
    %11 = arith.divf %9, %10 : vector<8x1xf32>
    %cst_4 = arith.constant 9.99999974E-6 : f32
    %12 = vector.broadcast %cst_4 : f32 to vector<8x1xf32>
    %13 = arith.addf %11, %12 : vector<8x1xf32>
    %14 = math.rsqrt %13 : vector<8x1xf32>
    %15 = vector.broadcast %14 : vector<8x1xf32> to vector<8x32xf32>
    %16 = arith.mulf %6, %15 : vector<8x32xf32>
    %c0_5 = arith.constant 0 : index
    %c0_6 = arith.constant 0 : index
    %17 = vector.load %arg2[%c0_5, %c0_6] : memref<32x128xf32, #tpu.memory_space<vmem>>, vector<32x128xf32>
    %cst_7 = arith.constant dense<0.000000e+00> : vector<8x128xf32>
    %18 = tpu.matmul %16, %17, %cst_7 {dimension_numbers = #tpu.dot_dimension_numbers<[1], [0], [0], [1], [0, 0, 1, 1], [], []>} : vector<8x32xf32>, vector<32x128xf32>, vector<8x128xf32> -> vector<8x128xf32>
    %c0_8 = arith.constant 0 : index
    %c0_9 = arith.constant 0 : index
    %19 = vector.load %arg3[%c0_8, %c0_9] : memref<1x128xf32, #tpu.memory_space<vmem>>, vector<1x128xf32>
    %20 = vector.broadcast %19 : vector<1x128xf32> to vector<8x128xf32>
    %21 = arith.addf %18, %20 : vector<8x128xf32>
    %22 = arith.negf %21 : vector<8x128xf32>
    %23 = math.exp %22 : vector<8x128xf32>
    %cst_10 = arith.constant 1.000000e+00 : f32
    %24 = vector.broadcast %cst_10 : f32 to vector<8x128xf32>
    %25 = arith.addf %24, %23 : vector<8x128xf32>
    %26 = arith.divf %24, %25 : vector<8x128xf32>
    %27 = arith.mulf %21, %26 : vector<8x128xf32>
    %c0_11 = arith.constant 0 : index
    %c0_12 = arith.constant 0 : index
    %28 = vector.load %arg4[%c0_11, %c0_12] : memref<128x32xf32, #tpu.memory_space<vmem>>, vector<128x32xf32>
    %cst_13 = arith.constant dense<0.000000e+00> : vector<8x32xf32>
    %29 = tpu.matmul %27, %28, %cst_13 {dimension_numbers = #tpu.dot_dimension_numbers<[1], [0], [0], [1], [0, 0, 1, 1], [], []>} : vector<8x128xf32>, vector<128x32xf32>, vector<8x32xf32> -> vector<8x32xf32>
    %c0_14 = arith.constant 0 : index
    %c0_15 = arith.constant 0 : index
    %30 = vector.load %arg5[%c0_14, %c0_15] : memref<1x32xf32, #tpu.memory_space<vmem>>, vector<1x32xf32>
    %31 = vector.broadcast %30 : vector<1x32xf32> to vector<8x32xf32>
    %32 = arith.addf %29, %31 : vector<8x32xf32>
    %c0_16 = arith.constant 0 : index
    %c0_17 = arith.constant 0 : index
    %33 = vector.load %arg6[%c0_16, %c0_17] : memref<8x32xf32, #tpu.memory_space<vmem>>, vector<8x32xf32>
    tpu.vector_store %arg6[%c0_16, %c0_17], %32 {strides = array<i32>} : memref<8x32xf32, #tpu.memory_space<vmem>>, vector<8x32xf32>,
    return
  }
  func.func @transform_0(%arg0: i32) -> (i32, i32) {
    %c0_i32 = arith.constant 0 : i32
    %c0_i32_0 = arith.constant 0 : i32
    return %arg0, %c0_i32 : i32, i32
  }
  func.func @transform_1(%arg0: i32) -> (i32, i32) {
    %c0_i32 = arith.constant 0 : i32
    %c0_i32_0 = arith.constant 0 : i32
    %c0_i32_1 = arith.constant 0 : i32
    return %c0_i32, %c0_i32_0 : i32, i32
  }
  func.func @transform_2(%arg0: i32) -> (i32, i32) {
    %c0_i32 = arith.constant 0 : i32
    %c0_i32_0 = arith.constant 0 : i32
    %c0_i32_1 = arith.constant 0 : i32
    return %c0_i32, %c0_i32_0 : i32, i32
  }
  func.func @transform_3(%arg0: i32) -> (i32, i32) {
    %c0_i32 = arith.constant 0 : i32
    %c0_i32_0 = arith.constant 0 : i32
    %c0_i32_1 = arith.constant 0 : i32
    return %c0_i32, %c0_i32_0 : i32, i32
  }
  func.func @transform_4(%arg0: i32) -> (i32, i32) {
    %c0_i32 = arith.constant 0 : i32
    %c0_i32_0 = arith.constant 0 : i32
    %c0_i32_1 = arith.constant 0 : i32
    return %c0_i32, %c0_i32_0 : i32, i32
  }
  func.func @transform_5(%arg0: i32) -> (i32, i32) {
    %c0_i32 = arith.constant 0 : i32
    %c0_i32_0 = arith.constant 0 : i32
    return %arg0, %c0_i32 : i32, i32
  }
}

</mosaic_0001>

<llo_original>
// kernel: tpu_custom_call.1
$region0: #{tpu_custom_call.1}
  #allocation0 [shape = 'u32[]', space=smem, size = 0x4, offset = 0x4, fixed_abs, tag = 'smem constant byte address 0x4 - core index']
  #allocation1 [shape = 'u32[144,128]{1,0:T(1,128)}', space=vmem, size = 0x12000, scoped, tag = 'internal scratch']
  %s0 = inlined_call_operand.vmem [shape: f32[16,32], index: 0, kind: input, shape index: {}]
  %s1 = inlined_call_operand.vmem [shape: f32[32,128], index: 1, kind: input, shape index: {}]
  %s2 = inlined_call_operand.vmem [shape: f32[1,128], index: 2, kind: input, shape index: {}]
  %s3 = inlined_call_operand.vmem [shape: f32[128,32], index: 3, kind: input, shape index: {}]
  %s4 = inlined_call_operand.vmem [shape: f32[1,32], index: 4, kind: input, shape index: {}]
  %s5 = inlined_call_operand.hbm [shape: f32[16,32], index: 5, kind: output, shape index: {}]
  %s6 = sld [smem:[#allocation0]]
  $region53: #{tpu_custom_call.1} parent=0
    _
  %s8 = ssub.s32 1, %s6
  %s9 = scalar_select 0, %s8, %s6
  $region1: #{tpu_custom_call.1} parent=0
    #allocation2 [shape = 'u8[8192]{0}', space=vmem, size = 0x2000, scoped, tag = 'output window, operand 0']
    #allocation3 [shape = 's32[2]{0}', space=sflag, size = 0x8, scoped, tag = 'scoped memory for tpu_custom_call.1']
    %10 = vsyncpa [#allocation3], 0
    %s11 = scalar_lea.sflag [#allocation3], 1
    %12 = vsyncpa %s11, 0
    loop: start=0, step=1, limit=4
    $region2: #{tpu_custom_call.1} parent=1 // loop_pre_header
      _
    $region3: #{tpu_custom_call.1} parent=1 // loop_header
      %s14 = sphi 0, %s18
      %p15 = scmp.ge.s32.totalorder %s14, 4
      %s24 = sphi 0, %s26
      %s27 = sphi 0, %s24
      %s28 = sphi 0, %s27
      %s44 = sphi 0, %s28
      %s48 = sphi 0, %s48
      %s50 = sphi 0, %s48
      %s51 = sphi 0, %s50
      %s65 = sphi 0, %s51
      %s69 = sphi 0, %s69
      %s71 = sphi 0, %s69
      %s72 = sphi 0, %s71
      %s86 = sphi 0, %s72
      %s90 = sphi 0, %s90
      %s92 = sphi 0, %s90
      %s93 = sphi 0, %s92
      %s107 = sphi 0, %s93
      %s111 = sphi 0, %s111
      %s113 = sphi 0, %s111
      %s114 = sphi 0, %s113
      %s128 = sphi 0, %s114
      %s134 = sphi 0, %s136
      %s137 = sphi 0, %s134
      %s138 = sphi 0, %s137
      %s154 = sphi 0, %s138
    $region4: #{tpu_custom_call.1} parent=1 // loop_header_branch
      %17 = sbr.rel (%p15) target = $region8
    $region5: #{tpu_custom_call.1} parent=1 // loop_body
      %s19 = ssub.s32 %s14, 1
      %s20 = ssub.s32 %s14, 2
      %s21 = sadd.s32 %s14, 1
      %s22 = ssub.s32 %s14, %s21
      %p23 = scmp.eq.s32.totalorder %s22, 0
      %s25 = sadd.s32 %s24, 1
      %s26 = scalar_select %p23, %s24, %s25
      %p29 = pneg %p23
      %p30 = scmp.eq.s32.totalorder %s14, 1
      %p31 = por %p29, %p30
      %p32 = scmp.ne.s32.totalorder %s24, %s27
      %p33 = scmp.eq.s32.totalorder %s14, 0
      %p34 = por %p32, %p33
      %p35 = scmp.ne.s32.totalorder %s24, %s27
      %p36 = scmp.eq.s32.totalorder %s19, 1
      %p37 = por %p35, %p36
      %p38 = scmp.ne.s32.totalorder %s27, %s28
      %p39 = scmp.eq.s32.totalorder %s19, 0
      %p40 = por %p38, %p39
      %p41 = scmp.ne.s32.totalorder %s27, %s28
      %p42 = scmp.eq.s32.totalorder %s20, 1
      %p43 = por %p41, %p42
      %p45 = scmp.ne.s32.totalorder %s28, %s44
      %p46 = scmp.eq.s32.totalorder %s20, 0
      %p47 = por %p45, %p46
      %s49 = sadd.s32 %s48, 1
      %p52 = scmp.eq.s32.totalorder %s14, 1
      %p53 = scmp.ne.s32.totalorder %s48, %s50
      %p54 = scmp.eq.s32.totalorder %s14, 0
      %p55 = por %p53, %p54
      %p56 = scmp.ne.s32.totalorder %s48, %s50
      %p57 = scmp.eq.s32.totalorder %s19, 1
      %p58 = por %p56, %p57
      %p59 = scmp.ne.s32.totalorder %s50, %s51
      %p60 = scmp.eq.s32.totalorder %s19, 0
      %p61 = por %p59, %p60
      %p62 = scmp.ne.s32.totalorder %s50, %s51
      %p63 = scmp.eq.s32.totalorder %s20, 1
      %p64 = por %p62, %p63
      %p66 = scmp.ne.s32.totalorder %s51, %s65
      %p67 = scmp.eq.s32.totalorder %s20, 0
      %p68 = por %p66, %p67
      %s70 = sadd.s32 %s69, 1
      %p73 = scmp.eq.s32.totalorder %s14, 1
      %p74 = scmp.ne.s32.totalorder %s69, %s71
      %p75 = scmp.eq.s32.totalorder %s14, 0
      %p76 = por %p74, %p75
      %p77 = scmp.ne.s32.totalorder %s69, %s71
      %p78 = scmp.eq.s32.totalorder %s19, 1
      %p79 = por %p77, %p78
      %p80 = scmp.ne.s32.totalorder %s71, %s72
      %p81 = scmp.eq.s32.totalorder %s19, 0
      %p82 = por %p80, %p81
      %p83 = scmp.ne.s32.totalorder %s71, %s72
      %p84 = scmp.eq.s32.totalorder %s20, 1
      %p85 = por %p83, %p84
      %p87 = scmp.ne.s32.totalorder %s72, %s86
      %p88 = scmp.eq.s32.totalorder %s20, 0
      %p89 = por %p87, %p88
      %s91 = sadd.s32 %s90, 1
      %p94 = scmp.eq.s32.totalorder %s14, 1
      %p95 = scmp.ne.s32.totalorder %s90, %s92
      %p96 = scmp.eq.s32.totalorder %s14, 0
      %p97 = por %p95, %p96
      %p98 = scmp.ne.s32.totalorder %s90, %s92
      %p99 = scmp.eq.s32.totalorder %s19, 1
      %p100 = por %p98, %p99
      %p101 = scmp.ne.s32.totalorder %s92, %s93
      %p102 = scmp.eq.s32.totalorder %s19, 0
      %p103 = por %p101, %p102
      %p104 = scmp.ne.s32.totalorder %s92, %s93
      %p105 = scmp.eq.s32.totalorder %s20, 1
      %p106 = por %p104, %p105
      %p108 = scmp.ne.s32.totalorder %s93, %s107
      %p109 = scmp.eq.s32.totalorder %s20, 0
      %p110 = por %p108, %p109
      %s112 = sadd.s32 %s111, 1
      %p115 = scmp.eq.s32.totalorder %s14, 1
      %p116 = scmp.ne.s32.totalorder %s111, %s113
      %p117 = scmp.eq.s32.totalorder %s14, 0
      %p118 = por %p116, %p117
      %p119 = scmp.ne.s32.totalorder %s111, %s113
      %p120 = scmp.eq.s32.totalorder %s19, 1
      %p121 = por %p119, %p120
      %p122 = scmp.ne.s32.totalorder %s113, %s114
      %p123 = scmp.eq.s32.totalorder %s19, 0
      %p124 = por %p122, %p123
      %p125 = scmp.ne.s32.totalorder %s113, %s114
      %p126 = scmp.eq.s32.totalorder %s20, 1
      %p127 = por %p125, %p126
      %p129 = scmp.ne.s32.totalorder %s114, %s128
      %p130 = scmp.eq.s32.totalorder %s20, 0
      %p131 = por %p129, %p130
      %s132 = ssub.s32 %s14, %s21
      %p133 = scmp.eq.s32.totalorder %s132, 0
      %s135 = sadd.s32 %s134, 1
      %s136 = scalar_select %p133, %s134, %s135
      %p139 = pneg %p133
      %p140 = scmp.eq.s32.totalorder %s14, 1
      %p141 = por %p139, %p140
      %p142 = scmp.ne.s32.totalorder %s134, %s137
      %p143 = scmp.eq.s32.totalorder %s14, 0
      %p144 = por %p142, %p143
      %p145 = scmp.ne.s32.totalorder %s134, %s137
      %p146 = scmp.eq.s32.totalorder %s19, 1
      %p147 = por %p145, %p146
      %p148 = scmp.ne.s32.totalorder %s137, %s138
      %p149 = scmp.eq.s32.totalorder %s19, 0
      %p150 = por %p148, %p149
      %p151 = scmp.ne.s32.totalorder %s137, %s138
      %p152 = scmp.eq.s32.totalorder %s20, 1
      %p153 = por %p151, %p152
      %p155 = scmp.ne.s32.totalorder %s138, %s154
      %p156 = scmp.eq.s32.totalorder %s20, 0
      %p157 = por %p155, %p156
      %p158 = scmp.le.s32.totalorder 1, %s14
      %p159 = scmp.lt.s32.totalorder %s14, 3
      %p160 = pnand %p158, %p159
      %p161 = pneg %p160
      // Predicated region
      $region9: #{tpu_custom_call.1} parent=5 // pred_check
        _
      $region10: #{tpu_custom_call.1} parent=5 // pred_check_branch
        %163 = sbr.rel (%p160) target = $region12
      $region11: #{tpu_custom_call.1} parent=5 // pred_region
        %s164 = ssub.s32 %s14, 1
        // Predicated region
        $region13: #{tpu_custom_call.1} parent=11 // pred_check
          %p165 = pneg %p61
        $region14: #{tpu_custom_call.1} parent=11 // pred_check_branch
          %167 = sbr.rel (%p165) target = $region16
        $region15: #{tpu_custom_call.1} parent=11 // pred_region
          _
        $region16: #{tpu_custom_call.1} parent=11 // pred_fallthru
          _
        // Predicated region
        $region17: #{tpu_custom_call.1} parent=11 // pred_check
          %p168 = pneg %p82
        $region18: #{tpu_custom_call.1} parent=11 // pred_check_branch
          %170 = sbr.rel (%p168) target = $region20
        $region19: #{tpu_custom_call.1} parent=11 // pred_region
          _
        $region20: #{tpu_custom_call.1} parent=11 // pred_fallthru
          _
        // Predicated region
        $region21: #{tpu_custom_call.1} parent=11 // pred_check
          %p171 = pneg %p103
        $region22: #{tpu_custom_call.1} parent=11 // pred_check_branch
          %173 = sbr.rel (%p171) target = $region24
        $region23: #{tpu_custom_call.1} parent=11 // pred_region
          _
        $region24: #{tpu_custom_call.1} parent=11 // pred_fallthru
          _
        // Predicated region
        $region25: #{tpu_custom_call.1} parent=11 // pred_check
          %p174 = pneg %p124
        $region26: #{tpu_custom_call.1} parent=11 // pred_check_branch
          %176 = sbr.rel (%p174) target = $region28
        $region27: #{tpu_custom_call.1} parent=11 // pred_region
          _
        $region28: #{tpu_custom_call.1} parent=11 // pred_fallthru
          _
      $region12: #{tpu_custom_call.1} parent=5 // pred_fallthru
        _
      %p177 = scmp.lt.s32.totalorder %s14, 2
      // Predicated region
      $region29: #{tpu_custom_call.1} parent=5 // pred_check
        %p178 = pneg %p177
      $region30: #{tpu_custom_call.1} parent=5 // pred_check_branch
        %180 = sbr.rel (%p178) target = $region32
      $region31: #{tpu_custom_call.1} parent=5 // pred_region
        // Predicated region
        $region33: #{tpu_custom_call.1} parent=31 // pred_check
          %p181 = pneg %p34
        $region34: #{tpu_custom_call.1} parent=31 // pred_check_branch
          %183 = sbr.rel (%p181) target = $region36
        $region35: #{tpu_custom_call.1} parent=31 // pred_region
          %p184 = scmp.lt.s32.totalorder %s14, 1
          %s185 = scalar_select %p184, %s14, 1
          %s186 = smul.addr %s185, 8
          %s187 = scalar_lea.vmem %s0, %s186
        $region36: #{tpu_custom_call.1} parent=31 // pred_fallthru
          _
      $region32: #{tpu_custom_call.1} parent=5 // pred_fallthru
        _
      %p188 = scmp.le.s32.totalorder 1, %s14
      %p189 = scmp.lt.s32.totalorder %s14, 3
      %p190 = pnand %p188, %p189
      %p191 = pneg %p190
      // Predicated region
      $region37: #{tpu_custom_call.1} parent=5 // pred_check
        _
      $region38: #{tpu_custom_call.1} parent=5 // pred_check_branch
        %193 = sbr.rel (%p190) target = $region40
      $region39: #{tpu_custom_call.1} parent=5 // pred_region
        %s194 = ssub.s32 %s14, 1
        %p195 = scmp.lt.s32.totalorder %s19, 1
        %s196 = scalar_select %p195, %s19, 1
        %s197 = smul.addr %s196, 8
        %s198 = scalar_lea.vmem %s0, %s197
        %p199 = pneg %p40
        %p200 = pneg %p37
        %p201 = pneg %p61
        %p202 = pneg %p58
        %p203 = pneg %p82
        %p204 = pneg %p79
        %p205 = pneg %p103
        %p206 = pneg %p100
        %p207 = pneg %p124
        %p208 = pneg %p121
        %p209 = pneg %p150
        %p210 = pneg %p147
        %s211 = sand.u32 %s137, 1
        %s212 = scalar_lea.sflag [#allocation3], %s211
        %s213 = sand.u32 %s137, 1
        %s214 = smul.addr %s213, 8
        %s215 = scalar_lea.vmem [#allocation2], %s214
        %p216 = scmp.lt.s32.totalorder %s19, 1
        %s217 = scalar_select %p216, %s19, 1
        %s218 = smul.addr %s217, 8
        %s219 = scalar_lea.vmem %s0, %s218
        %v220 = vld [vmem:[%s219] sm:$0xff]
        %vm221 = vcmask 261120
        %v222 = vsel %vm221, %v220, 0.0
        %223 = vadd.xlane.f32.xlu0 %v222
        %v224 = vpop.xlane.xlu0 %223
        %v225 = vrcp.pop 32.0
        %v226 = vmul.f32 %v224, %v225
        %v227 = vsub.f32 %v220, %v226
        %v228 = vmul.f32 %v227, %v227
        %v229 = vsel %vm221, %v228, 0.0
        %230 = vadd.xlane.f32.xlu0 %v229
        %v231 = vpop.xlane.xlu0 %230
        %v232 = vmul.f32 %v231, %v225
        %v233 = vadd.f32 %v232, 1e-05
        %v234 = vrsqrt.pop %v233
        %v235 = vmul.f32 %v227, %v234
        %v236 = vld [vmem:[%s1] sm:$0xff]
        %v237 = vld [vmem:[%s1 + $0x8] sm:$0xff]
        %v238 = vld [vmem:[%s1 + $0x10] sm:$0xff]
        %v239 = vld [vmem:[%s1 + $0x18] sm:$0xff]
        %v240 = vld [vmem:[%s2] sm:$0x1]
        %v242 = vlaneseq
        %v243 = vshrl.u32 %v242, 7
        %v244 = vsub.s32 0, %v243
        %v245 = vrot.slane %v240, %v244
        %v248 = vsel %vm221, %v235, 0
        %250 = vmatprep.subr.mxu0 0.0
        %251 = vmatpush1.msra.mxu0 %v236
        %252 = vmatprep.subr.mxu0 0.0
        %253 = vmatpush1.msra.mxu0 %v237
        %254 = vmatprep.subr.mxu0 0.0
        %255 = vmatpush1.msra.mxu0 %v238
        %256 = vmatprep.subr.mxu0 0.0
        %257 = vmatpush1.msra.mxu0 %v239
        %258 = vmatprep.subr.mxu0 0.0
        %259 = vmatpush1.msra.mxu0 0.0
        %260 = vmatprep.subr.mxu0 0.0
        %261 = vmatpush1.msra.mxu0 0.0
        %262 = vmatprep.subr.mxu0 0.0
        %263 = vmatpush1.msra.mxu0 0.0
        %264 = vmatprep.subr.mxu0 0.0
        %265 = vmatpush1.msra.mxu0 0.0
        %266 = vmatprep.subr.mxu0 0.0
        %267 = vmatpush1.msra.mxu0 0.0
        %268 = vmatprep.subr.mxu0 0.0
        %269 = vmatpush1.msra.mxu0 0.0
        %270 = vmatprep.subr.mxu0 0.0
        %271 = vmatpush1.msra.mxu0 0.0
        %272 = vmatprep.subr.mxu0 0.0
        %273 = vmatpush1.msra.mxu0 0.0
        %274 = vmatprep.subr.mxu0 0.0
        %275 = vmatpush1.msra.mxu0 0.0
        %276 = vmatprep.subr.mxu0 0.0
        %277 = vmatpush1.msra.mxu0 0.0
        %278 = vmatprep.subr.mxu0 0.0
        %279 = vmatpush1.msra.mxu0 0.0
        %280 = vmatprep.subr.mxu0 0.0
        %281 = vmatpush1.msra.mxu0 0.0
        %282 = vmatprep.subr.mxu0 0.0
        %283 = vmatpush1.msra.mxu0 0.0
        %284 = vmatprep.subr.mxu0 0.0
        %285 = vmatpush1.msra.mxu0 0.0
        %286 = vmatprep.subr.mxu0 0.0
        %287 = vmatpush1.msra.mxu0 0.0
        %288 = vmatprep.subr.mxu0 0.0
        %289 = vmatpush1.msra.mxu0 0.0
        %290 = vmatprep.subr.mxu0 0.0
        %291 = vmatpush1.msra.mxu0 0.0
        %292 = vmatprep.subr.mxu0 0.0
        %293 = vmatpush1.msra.mxu0 0.0
        %294 = vmatprep.subr.mxu0 0.0
        %295 = vmatpush1.msra.mxu0 0.0
        %296 = vmatprep.subr.mxu0 0.0
        %297 = vmatpush1.msra.mxu0 0.0
        %298 = vmatprep.subr.mxu0 0.0
        %299 = vmatpush1.msra.mxu0 0.0
        %300 = vmatprep.subr.mxu0 0.0
        %301 = vmatpush1.msra.mxu0 0.0
        %302 = vmatprep.subr.mxu0 0.0
        %303 = vmatpush1.msra.mxu0 0.0
        %304 = vmatprep.subr.mxu0 0.0
        %305 = vmatpush1.msra.mxu0 0.0
        %306 = vmatprep.subr.mxu0 0.0
        %307 = vmatpush1.msra.mxu0 0.0
        %308 = vmatprep.subr.mxu0 0.0
        %309 = vmatpush1.msra.mxu0 0.0
        %310 = vmatprep.subr.mxu0 0.0
        %311 = vmatpush1.msra.mxu0 0.0
        %312 = vmatprep.subr.mxu0 0.0
        %313 = vmatpush1.msra.mxu0 0.0
        %314 = vmatprep.mubr.f32.mxu0 0.0
        %315 = vmatmul.mubr.f32.gmra.mrb[0].mxu0 %v248
        %v316 = vpop.f32.mrb[0].mxu0
        %v317 = vadd.f32 %v245, %v316
        %v318 = vpop.f32.mrb[0].mxu0
        %319 = vdwg.mxu0
        %v320 = vxor.u32 %v317, 2147483648
        %v321 = vmul.f32 %v320, 1.442695
        %v322 = vpow.pop %v321
        %v323 = vadd.f32 %v322, 1.0
        %v324 = vrcp.pop %v323
        %v325 = vmul.f32 1.0, %v324
        %v326 = vmul.f32 %v317, %v325
        %v327 = vld [vmem:[%s3] sm:$0xff]
        %v328 = vld [vmem:[%s3 + $0x8] sm:$0xff]
        %v329 = vld [vmem:[%s3 + $0x10] sm:$0xff]
        %v330 = vld [vmem:[%s3 + $0x18] sm:$0xff]
        %v331 = vld [vmem:[%s3 + $0x20] sm:$0xff]
        %v332 = vld [vmem:[%s3 + $0x28] sm:$0xff]
        %v333 = vld [vmem:[%s3 + $0x30] sm:$0xff]
        %v334 = vld [vmem:[%s3 + $0x38] sm:$0xff]
        %v335 = vld [vmem:[%s3 + $0x40] sm:$0xff]
        %v336 = vld [vmem:[%s3 + $0x48] sm:$0xff]
        %v337 = vld [vmem:[%s3 + $0x50] sm:$0xff]
        %v338 = vld [vmem:[%s3 + $0x58] sm:$0xff]
        %v339 = vld [vmem:[%s3 + $0x60] sm:$0xff]
        %v340 = vld [vmem:[%s3 + $0x68] sm:$0xff]
        %v341 = vld [vmem:[%s3 + $0x70] sm:$0xff]
        %v342 = vld [vmem:[%s3 + $0x78] sm:$0xff]
        %v343 = vld [vmem:[%s4] sm:$0x1]
        %v345 = vlaneseq
        %v346 = vshrl.u32 %v345, 7
        %v347 = vsub.s32 0, %v346
        %v348 = vrot.slane %v343, %v347
        %350 = vmatprep.subr.mxu0 0.0
        %351 = vmatpush1.msra.mxu0 %v327
        %352 = vmatprep.subr.mxu0 0.0
        %353 = vmatpush1.msra.mxu0 %v328
        %354 = vmatprep.subr.mxu0 0.0
        %355 = vmatpush1.msra.mxu0 %v329
        %356 = vmatprep.subr.mxu0 0.0
        %357 = vmatpush1.msra.mxu0 %v330
        %358 = vmatprep.subr.mxu0 0.0
        %359 = vmatpush1.msra.mxu0 %v331
        %360 = vmatprep.subr.mxu0 0.0
        %361 = vmatpush1.msra.mxu0 %v332
        %362 = vmatprep.subr.mxu0 0.0
        %363 = vmatpush1.msra.mxu0 %v333
        %364 = vmatprep.subr.mxu0 0.0
        %365 = vmatpush1.msra.mxu0 %v334
        %366 = vmatprep.subr.mxu0 0.0
        %367 = vmatpush1.msra.mxu0 %v335
        %368 = vmatprep.subr.mxu0 0.0
        %369 = vmatpush1.msra.mxu0 %v336
        %370 = vmatprep.subr.mxu0 0.0
        %371 = vmatpush1.msra.mxu0 %v337
        %372 = vmatprep.subr.mxu0 0.0
        %373 = vmatpush1.msra.mxu0 %v338
        %374 = vmatprep.subr.mxu0 0.0
        %375 = vmatpush1.msra.mxu0 %v339
        %376 = vmatprep.subr.mxu0 0.0
        %377 = vmatpush1.msra.mxu0 %v340
        %378 = vmatprep.subr.mxu0 0.0
        %379 = vmatpush1.msra.mxu0 %v341
        %380 = vmatprep.subr.mxu0 0.0
        %381 = vmatpush1.msra.mxu0 %v342
        %382 = vmatprep.subr.mxu0 0.0
        %383 = vmatpush1.msra.mxu0 0.0
        %384 = vmatprep.subr.mxu0 0.0
        %385 = vmatpush1.msra.mxu0 0.0
        %386 = vmatprep.subr.mxu0 0.0
        %387 = vmatpush1.msra.mxu0 0.0
        %388 = vmatprep.subr.mxu0 0.0
        %389 = vmatpush1.msra.mxu0 0.0
        %390 = vmatprep.subr.mxu0 0.0
        %391 = vmatpush1.msra.mxu0 0.0
        %392 = vmatprep.subr.mxu0 0.0
        %393 = vmatpush1.msra.mxu0 0.0
        %394 = vmatprep.subr.mxu0 0.0
        %395 = vmatpush1.msra.mxu0 0.0
        %396 = vmatprep.subr.mxu0 0.0
        %397 = vmatpush1.msra.mxu0 0.0
        %398 = vmatprep.subr.mxu0 0.0
        %399 = vmatpush1.msra.mxu0 0.0
        %400 = vmatprep.subr.mxu0 0.0
        %401 = vmatpush1.msra.mxu0 0.0
        %402 = vmatprep.subr.mxu0 0.0
        %403 = vmatpush1.msra.mxu0 0.0
        %404 = vmatprep.subr.mxu0 0.0
        %405 = vmatpush1.msra.mxu0 0.0
        %406 = vmatprep.subr.mxu0 0.0
        %407 = vmatpush1.msra.mxu0 0.0
        %408 = vmatprep.subr.mxu0 0.0
        %409 = vmatpush1.msra.mxu0 0.0
        %410 = vmatprep.subr.mxu0 0.0
        %411 = vmatpush1.msra.mxu0 0.0
        %412 = vmatprep.subr.mxu0 0.0
        %413 = vmatpush1.msra.mxu0 0.0
        %414 = vmatprep.mubr.f32.mxu0 0.0
        %415 = vmatmul.mubr.f32.gmra.mrb[0].mxu0 %v326
        %v416 = vpop.f32.mrb[0].mxu0
        %v417 = vadd.f32 %v348, %v416
        %v418 = vpop.f32.mrb[0].mxu0
        %419 = vdwg.mxu0
        %420 = vst.msk [vmem:[%s215] sm:$0xff] %vm221, %v417
        %s421 = sand.u32 %s137, 1
        %s422 = scalar_lea.sflag [#allocation3], %s421
        %s423 = sand.u32 %s137, 1
        %s424 = smul.addr %s423, 8
        %s425 = scalar_lea.vmem [#allocation2], %s424
        // Predicated region
        $region41: #{tpu_custom_call.1} parent=39 // pred_check
          %p426 = pneg %p147
        $region42: #{tpu_custom_call.1} parent=39 // pred_check_branch
          %428 = sbr.rel (%p426) target = $region44
        $region43: #{tpu_custom_call.1} parent=39 // pred_region
          %s430 = ssub.s32 128, 128
          %431 = vsyncadd %s422, %s430
          %s432 = smul.addr %s19, 128
          %s433 = scalar_lea.hbm %s5, %s432
          %s435 = sshll.u32 %s425, 4
          %s436 = int_to_ptr.vmem [resolvable:$true] %s435
          %438 = dma.vmem_to_hbm [thread:$0]  %s436, 128, %s433, %s422
        $region44: #{tpu_custom_call.1} parent=39 // pred_fallthru
          _
      $region40: #{tpu_custom_call.1} parent=5 // pred_fallthru
        _
      %p439 = scmp.le.s32.totalorder 2, %s14
      // Predicated region
      $region45: #{tpu_custom_call.1} parent=5 // pred_check
        %p440 = pneg %p439
      $region46: #{tpu_custom_call.1} parent=5 // pred_check_branch
        %442 = sbr.rel (%p440) target = $region48
      $region47: #{tpu_custom_call.1} parent=5 // pred_region
        %s443 = ssub.s32 %s14, 2
        // Predicated region
        $region49: #{tpu_custom_call.1} parent=47 // pred_check
          %p444 = pneg %p153
        $region50: #{tpu_custom_call.1} parent=47 // pred_check_branch
          %446 = sbr.rel (%p444) target = $region52
        $region51: #{tpu_custom_call.1} parent=47 // pred_region
          %s447 = sand.u32 %s138, 1
          %s448 = scalar_lea.sflag [#allocation3], %s447
          %s449 = sand.u32 %s138, 1
          %s450 = smul.addr %s449, 8
          %s451 = scalar_lea.vmem [#allocation2], %s450
          %452 = dma.done %s448, 128
        $region52: #{tpu_custom_call.1} parent=47 // pred_fallthru
          _
      $region48: #{tpu_custom_call.1} parent=5 // pred_fallthru
        _
    $region6: #{tpu_custom_call.1} parent=1 // loop_footer
      %s18 = sadd.s32 1, %s14
    $region7: #{tpu_custom_call.1} parent=1 // loop_footer_branch
      %13 = sbr.rel target = $region3
    $region8: #{tpu_custom_call.1} parent=1 // loop_exit
      _
    %453 = vsyncpa [#allocation3], 1
    %s454 = scalar_lea.sflag [#allocation3], 1
    %455 = vsyncpa %s454, 1

</llo_original>
